<compile_context>
chip_gen: v5e
topology: v5e:2x2
jax: 0.10.0
libtpu: 0.0.40
codegen_flags: <defaults>
</compile_context>

<pallas_src>
import functools

import jax
import jax.numpy as jnp
from jax import lax
from jax.experimental import pallas as pl
from jax.experimental.pallas import tpu as pltpu


# ------------------------------- Pallas kernel -------------------------------

def seq2seq_kernel(enc_x_ref, dec_x_ref, h0_ref,
                   enc_wih_ref, enc_whh_ref, enc_b_ref,
                   dec_wih_ref, dec_whh_ref, dec_b_ref,
                   w_q_ref, w_c_ref, b_out_ref,
                   dec_out_ref, attn_ref, *, mxu_dtype):
    """Fused: encoder RNN -> decoder RNN -> dot-attention -> output Linear."""
    B, S, H = enc_x_ref.shape
    T = dec_x_ref.shape[1]

    def run_rnn(x_ref, h0, wih_ref, whh_ref, b_ref):
        """Elman RNN (tanh), batch-major (B, L, H).  Returns (seq (B,L,H), h_final)."""
        Bx, L, Hh = x_ref.shape
        # Input projection hoisted off the recurrence as one big lane-dense MXU
        # matmul; low-precision operands are fine here (not on the serial path).
        wih = wih_ref[...].astype(mxu_dtype)                 # cast exactly once
        x2d = x_ref[...].reshape(Bx * L, Hh).astype(mxu_dtype)
        xproj = (jnp.dot(x2d, wih, preferred_element_type=jnp.float32)
                 + b_ref[...]).reshape(Bx, L, Hh)
        # Recurrence stays in f32: it is MXU push/pop-latency bound, and casting h
        # to bf16 every step would only compound error over the S+T steps.
        whh = whh_ref[...]
        h = h0
        hs = []
        for t in range(L):     # L is static & small -> full unroll, hs stay in vregs
            h = jnp.tanh(xproj[:, t, :]
                         + jnp.dot(h, whh, preferred_element_type=jnp.float32))
            hs.append(h)
        return jnp.stack(hs, axis=1), h       # one stack; no VMEM scratch round trip

    # --- Encoder RNN ---
    enc_seq, enc_h = run_rnn(enc_x_ref, h0_ref[...],
                             enc_wih_ref, enc_whh_ref, enc_b_ref)
    # --- Decoder RNN (initial hidden = encoder final hidden) ---
    dec_seq, _ = run_rnn(dec_x_ref, enc_h,
                         dec_wih_ref, dec_whh_ref, dec_b_ref)

    # --- Dot-product attention (scores / softmax in f32, exact reciprocal) ---
    enc_lp = enc_seq.astype(mxu_dtype)        # cast once, reused for scores+context
    dec_lp = dec_seq.astype(mxu_dtype)
    scores = jnp.einsum('bth,bsh->bts', dec_lp, enc_lp,
                        preferred_element_type=jnp.float32)
    m = jnp.max(scores, axis=-1, keepdims=True)
    e = jnp.exp(scores - m)
    attn = e * pl.reciprocal(jnp.sum(e, axis=-1, keepdims=True))   # exact softmax
    # (B, T_pad, S) store is lane-sparse (S=8) but tiny; wrapper slices T.
    attn_ref[...] = attn.astype(attn_ref.dtype)

    context = jnp.einsum('bts,bsh->bth', attn.astype(mxu_dtype), enc_lp,
                         preferred_element_type=jnp.float32)

    # --- Linear(2H -> V_pad) on concat([dec, context]) without materializing it,
    #     as two lane-dense (B*T, H) @ (H, V_pad) MXU matmuls.  V is padded to 128
    #     so this is an unmasked, fully lane-dense 2-D store.
    out = (jnp.dot(dec_lp.reshape(B * T, H), w_q_ref[...].astype(mxu_dtype),
                   preferred_element_type=jnp.float32)
           + jnp.dot(context.reshape(B * T, H).astype(mxu_dtype),
                     w_c_ref[...].astype(mxu_dtype),
                     preferred_element_type=jnp.float32)
           + b_out_ref[...])
    dec_out_ref[...] = out.astype(dec_out_ref.dtype)


# ------------------------------ Pallas wrapper --------------------------------

_VMEM = pl.BlockSpec(memory_space=pltpu.MemorySpace.VMEM)


def seq2seq_pallas(enc_emb, dec_emb, h0, kp, mxu_dtype=jnp.float32):
    """enc_emb: (B,S,H), dec_emb: (B,T_pad,H), h0: (B,H).
    Returns (logits (B*T_pad, V_pad), attn (B, T_pad, S))."""
    B, S, H = enc_emb.shape
    T_pad = dec_emb.shape[1]
    V_pad = kp['w_q'].shape[1]
    # TODO(synk): for large B (esp. v7x with 64 MiB VMEM) add a batch grid with
    # BlockSpec index_maps, dimension_semantics=("parallel",) and vmem_limit_bytes;
    # at B=2 the kernel is recurrence-latency bound and a megacore split would be
    # neutral-to-negative.
    kernel = functools.partial(seq2seq_kernel, mxu_dtype=mxu_dtype)
    return pl.pallas_call(
        kernel,
        out_shape=(jax.ShapeDtypeStruct((B * T_pad, V_pad), jnp.float32),
                   jax.ShapeDtypeStruct((B, T_pad, S), jnp.float32)),
        in_specs=[_VMEM] * 12,
        out_specs=(_VMEM, _VMEM),
    )(enc_emb, dec_emb, h0,
      kp['enc_w_ih'], kp['enc_w_hh'], kp['enc_b'],
      kp['dec_w_ih'], kp['dec_w_hh'], kp['dec_b'],
      kp['w_q'], kp['w_c'], kp['b_out'])


# ---------------------- weight prep (once, outside jit) -----------------------

def prepare_params(p):
    """Pre-transpose weights to (in, out), pre-sum biases, split the output Linear
    into rnn_output / context halves of the concat, and zero-pad the vocab dim of
    the output Linear to a multiple of 128 (lane-dense kernel store)."""
    H = p['enc_w_ih'].shape[0]
    V = p['w_out'].shape[0]
    V_pad = ((V + 127) // 128) * 128
    w_out_t = p['w_out'].T                                    # (2H, V)
    pad_v = lambda w: jnp.pad(w, ((0, 0), (0, V_pad - V)))
    return {
        'emb_enc': p['emb_enc'],
        'emb_dec': p['emb_dec'],
        'enc_w_ih': jnp.asarray(p['enc_w_ih'].T),
        'enc_w_hh': jnp.asarray(p['enc_w_hh'].T),
        'enc_b': (p['enc_b_ih'] + p['enc_b_hh'])[None, :],
        'dec_w_ih': jnp.asarray(p['dec_w_ih'].T),
        'dec_w_hh': jnp.asarray(p['dec_w_hh'].T),
        'dec_b': (p['dec_b_ih'] + p['dec_b_hh'])[None, :],
        'w_q': pad_v(w_out_t[:H, :]),                         # (H, V_pad)
        'w_c': pad_v(w_out_t[H:, :]),                         # (H, V_pad)
        'b_out': jnp.pad(p['b_out'], (0, V_pad - V))[None, :],  # (1, V_pad)
    }


# ------------------------------ Seq2Seq forward -------------------------------

@functools.partial(jax.jit, static_argnames=('n_out', 'mxu_dtype'))
def seq2seq_forward(enc_input, hidden, dec_input, kp, n_out,
                    mxu_dtype=jnp.float32):
    """Mirrors Seq2Seq.forward(enc_input, hidden, dec_input)."""
    h0 = hidden[0]                                            # (B, H)
    enc_emb = jnp.take(kp['emb_enc'], enc_input, axis=0)      # (B, S, H)
    dec_emb = jnp.take(kp['emb_dec'], dec_input, axis=0)      # (B, T, H)
    B, T = dec_input.shape
    T_pad = ((T + 7) // 8) * 8                                # sublane-align T
    dec_emb = jnp.pad(dec_emb, ((0, 0), (0, T_pad - T), (0, 0)))
    out2d, attn_p = seq2seq_pallas(enc_emb, dec_emb, h0, kp, mxu_dtype)
    V_pad = kp['w_q'].shape[1]
    dec_out = out2d.reshape(B, T_pad, V_pad)[:, :T, :n_out]
    attn = attn_p[:, :T, :]
    return dec_out, attn


# ------------------------------ Pure-JAX reference ----------------------------

def _rnn_ref(x_bt, h0, w_ih, w_hh, b_ih, b_hh):
    def step(h, x_t):
        h_new = jnp.tanh(x_t @ w_ih.T + b_ih + h @ w_hh.T + b_hh)
        return h_new, h_new
    h_final, ys = lax.scan(step, h0, jnp.transpose(x_bt, (1, 0, 2)))
    return jnp.transpose(ys, (1, 0, 2)), h_final


def seq2seq_ref(enc_input, hidden, dec_input, p):
    h0 = hidden[0]
    emb_e = jnp.take(p['emb_enc'], enc_input, axis=0)
    enc_out, enc_h = _rnn_ref(emb_e, h0, p['enc_w_ih'], p['enc_w_hh'],
                              p['enc_b_ih'], p['enc_b_hh'])
    emb_d = jnp.take(p['emb_dec'], dec_input, axis=0)
    dec_rnn, _ = _rnn_ref(emb_d, enc_h, p['dec_w_ih'], p['dec_w_hh'],
                          p['dec_b_ih'], p['dec_b_hh'])
    scores = jnp.einsum('bth,bsh->bts', dec_rnn, enc_out)
    attn = jax.nn.softmax(scores, axis=-1)
    context = jnp.einsum('bts,bsh->bth', attn, enc_out)
    cat = jnp.concatenate([dec_rnn, context], axis=-1)
    out = cat @ p['w_out'].T + p['b_out']
    return out, attn


# ----------------------------------- main -------------------------------------

if __name__ == "__main__":
    B, S_ENC, T_DEC = 2, 8, 6
    H = 128                     # n_hidden in the PyTorch spec
    V_CN, V_EN = 16, 20         # source / target vocab sizes

    key = jax.random.PRNGKey(0)
    ks = jax.random.split(key, 16)

    def init(k, shape, scale=0.1):
        return (scale * jax.random.normal(k, shape)).astype(jnp.float32)

    params = {
        'emb_enc': init(ks[0], (V_CN, H)),
        'enc_w_ih': init(ks[1], (H, H)),
        'enc_w_hh': init(ks[2], (H, H)),
        'enc_b_ih': init(ks[3], (H,)),
        'enc_b_hh': init(ks[4], (H,)),
        'emb_dec': init(ks[5], (V_EN, H)),
        'dec_w_ih': init(ks[6], (H, H)),
        'dec_w_hh': init(ks[7], (H, H)),
        'dec_b_ih': init(ks[8], (H,)),
        'dec_b_hh': init(ks[9], (H,)),
        'w_out': init(ks[10], (V_EN, 2 * H)),
        'b_out': init(ks[11], (V_EN,)),
    }
    kparams = prepare_params(params)   # once, outside jit

    enc_input = jax.random.randint(ks[12], (B, S_ENC), 0, V_CN, dtype=jnp.int32)
    dec_input = jax.random.randint(ks[13], (B, T_DEC), 0, V_EN, dtype=jnp.int32)
    hidden = jnp.zeros((1, B, H), dtype=jnp.float32)

    # f32 MXU operands
    dec_out, attn_w = seq2seq_forward(enc_input, hidden, dec_input, kparams, V_EN)
    jax.block_until_ready((dec_out, attn_w))

    ref_out, ref_attn = seq2seq_ref(enc_input, hidden, dec_input, params)
    assert dec_out.shape == (B, T_DEC, V_EN)
    assert attn_w.shape == (B, T_DEC, S_ENC)
    assert jnp.allclose(dec_out, ref_out, atol=2e-3, rtol=1e-3)
    assert jnp.allclose(attn_w, ref_attn, atol=1e-3, rtol=1e-3)

    # bf16 MXU operands on the non-recurrent matmuls only (recurrence stays f32),
    # f32 accumulation / elementwise everywhere.  Fine on v5e/v6e/v7x.
    dec_out_bf, attn_w_bf = seq2seq_forward(enc_input, hidden, dec_input, kparams,
                                            V_EN, mxu_dtype=jnp.bfloat16)
    jax.block_until_ready((dec_out_bf, attn_w_bf))
    assert jnp.allclose(dec_out_bf, ref_out, atol=2e-2, rtol=2e-2)
    assert jnp.allclose(attn_w_bf, ref_attn, atol=2e-2, rtol=2e-2)

    print("KERNEL_OK")
</pallas_src>

<mosaic_0001>
module attributes {stable_mosaic.version = 11 : i64} {
  func.func @seq2seq_kernel(%arg0: memref<2x8x128xf32, #tpu.memory_space<vmem>>, %arg1: memref<2x8x128xf32, #tpu.memory_space<vmem>>, %arg2: memref<2x128xf32, #tpu.memory_space<vmem>>, %arg3: memref<128x128xf32, #tpu.memory_space<vmem>>, %arg4: memref<128x128xf32, #tpu.memory_space<vmem>>, %arg5: memref<1x128xf32, #tpu.memory_space<vmem>>, %arg6: memref<128x128xf32, #tpu.memory_space<vmem>>, %arg7: memref<128x128xf32, #tpu.memory_space<vmem>>, %arg8: memref<1x128xf32, #tpu.memory_space<vmem>>, %arg9: memref<128x128xf32, #tpu.memory_space<vmem>>, %arg10: memref<128x128xf32, #tpu.memory_space<vmem>>, %arg11: memref<1x128xf32, #tpu.memory_space<vmem>>, %arg12: memref<16x128xf32, #tpu.memory_space<vmem>>, %arg13: memref<2x8x8xf32, #tpu.memory_space<vmem>>) attributes {dimension_semantics = [], scalar_prefetch = 0 : i64, scratch_operands = 0 : i64, tpu.core_type = #tpu.core_type<tc>} {
    %c0 = arith.constant 0 : index
    %c0_0 = arith.constant 0 : index
    %0 = vector.load %arg2[%c0, %c0_0] : memref<2x128xf32, #tpu.memory_space<vmem>>, vector<2x128xf32>
    %c0_1 = arith.constant 0 : index
    %c0_2 = arith.constant 0 : index
    %1 = vector.load %arg3[%c0_1, %c0_2] : memref<128x128xf32, #tpu.memory_space<vmem>>, vector<128x128xf32>
    %c0_3 = arith.constant 0 : index
    %c0_4 = arith.constant 0 : index
    %c0_5 = arith.constant 0 : index
    %2 = vector.load %arg0[%c0_3, %c0_4, %c0_5] : memref<2x8x128xf32, #tpu.memory_space<vmem>>, vector<2x8x128xf32>
    %3 = vector.shape_cast %2 : vector<2x8x128xf32> to vector<16x128xf32>
    %cst = arith.constant dense<0.000000e+00> : vector<16x128xf32>
    %4 = tpu.matmul %3, %1, %cst {dimension_numbers = #tpu.dot_dimension_numbers<[1], [0], [0], [1], [0, 0, 1, 1], [], []>} : vector<16x128xf32>, vector<128x128xf32>, vector<16x128xf32> -> vector<16x128xf32>
    %c0_6 = arith.constant 0 : index
    %c0_7 = arith.constant 0 : index
    %5 = vector.load %arg5[%c0_6, %c0_7] : memref<1x128xf32, #tpu.memory_space<vmem>>, vector<1x128xf32>
    %6 = vector.broadcast %5 : vector<1x128xf32> to vector<16x128xf32>
    %7 = arith.addf %4, %6 : vector<16x128xf32>
    %8 = vector.shape_cast %7 : vector<16x128xf32> to vector<2x8x128xf32>
    %c0_8 = arith.constant 0 : index
    %c0_9 = arith.constant 0 : index
    %9 = vector.load %arg4[%c0_8, %c0_9] : memref<128x128xf32, #tpu.memory_space<vmem>>, vector<128x128xf32>
    %10 = vector.extract_strided_slice %8 {offsets = [0, 0, 0], sizes = [2, 1, 128], strides = [1, 1, 1]} : vector<2x8x128xf32> to vector<2x1x128xf32>
    %11 = vector.shape_cast %10 : vector<2x1x128xf32> to vector<2x128xf32>
    %cst_10 = arith.constant dense<0.000000e+00> : vector<2x128xf32>
    %12 = tpu.matmul %0, %9, %cst_10 {dimension_numbers = #tpu.dot_dimension_numbers<[1], [0], [0], [1], [0, 0, 1, 1], [], []>} : vector<2x128xf32>, vector<128x128xf32>, vector<2x128xf32> -> vector<2x128xf32>
    %13 = arith.addf %11, %12 : vector<2x128xf32>
    %14 = math.tanh %13 : vector<2x128xf32>
    %15 = vector.extract_strided_slice %8 {offsets = [0, 1, 0], sizes = [2, 1, 128], strides = [1, 1, 1]} : vector<2x8x128xf32> to vector<2x1x128xf32>
    %16 = vector.shape_cast %15 : vector<2x1x128xf32> to vector<2x128xf32>
    %cst_11 = arith.constant dense<0.000000e+00> : vector<2x128xf32>
    %17 = tpu.matmul %14, %9, %cst_11 {dimension_numbers = #tpu.dot_dimension_numbers<[1], [0], [0], [1], [0, 0, 1, 1], [], []>} : vector<2x128xf32>, vector<128x128xf32>, vector<2x128xf32> -> vector<2x128xf32>
    %18 = arith.addf %16, %17 : vector<2x128xf32>
    %19 = math.tanh %18 : vector<2x128xf32>
    %20 = vector.extract_strided_slice %8 {offsets = [0, 2, 0], sizes = [2, 1, 128], strides = [1, 1, 1]} : vector<2x8x128xf32> to vector<2x1x128xf32>
    %21 = vector.shape_cast %20 : vector<2x1x128xf32> to vector<2x128xf32>
    %cst_12 = arith.constant dense<0.000000e+00> : vector<2x128xf32>
    %22 = tpu.matmul %19, %9, %cst_12 {dimension_numbers = #tpu.dot_dimension_numbers<[1], [0], [0], [1], [0, 0, 1, 1], [], []>} : vector<2x128xf32>, vector<128x128xf32>, vector<2x128xf32> -> vector<2x128xf32>
    %23 = arith.addf %21, %22 : vector<2x128xf32>
    %24 = math.tanh %23 : vector<2x128xf32>
    %25 = vector.extract_strided_slice %8 {offsets = [0, 3, 0], sizes = [2, 1, 128], strides = [1, 1, 1]} : vector<2x8x128xf32> to vector<2x1x128xf32>
    %26 = vector.shape_cast %25 : vector<2x1x128xf32> to vector<2x128xf32>
    %cst_13 = arith.constant dense<0.000000e+00> : vector<2x128xf32>
    %27 = tpu.matmul %24, %9, %cst_13 {dimension_numbers = #tpu.dot_dimension_numbers<[1], [0], [0], [1], [0, 0, 1, 1], [], []>} : vector<2x128xf32>, vector<128x128xf32>, vector<2x128xf32> -> vector<2x128xf32>
    %28 = arith.addf %26, %27 : vector<2x128xf32>
    %29 = math.tanh %28 : vector<2x128xf32>
    %30 = vector.extract_strided_slice %8 {offsets = [0, 4, 0], sizes = [2, 1, 128], strides = [1, 1, 1]} : vector<2x8x128xf32> to vector<2x1x128xf32>
    %31 = vector.shape_cast %30 : vector<2x1x128xf32> to vector<2x128xf32>
    %cst_14 = arith.constant dense<0.000000e+00> : vector<2x128xf32>
    %32 = tpu.matmul %29, %9, %cst_14 {dimension_numbers = #tpu.dot_dimension_numbers<[1], [0], [0], [1], [0, 0, 1, 1], [], []>} : vector<2x128xf32>, vector<128x128xf32>, vector<2x128xf32> -> vector<2x128xf32>
    %33 = arith.addf %31, %32 : vector<2x128xf32>
    %34 = math.tanh %33 : vector<2x128xf32>
    %35 = vector.extract_strided_slice %8 {offsets = [0, 5, 0], sizes = [2, 1, 128], strides = [1, 1, 1]} : vector<2x8x128xf32> to vector<2x1x128xf32>
    %36 = vector.shape_cast %35 : vector<2x1x128xf32> to vector<2x128xf32>
    %cst_15 = arith.constant dense<0.000000e+00> : vector<2x128xf32>
    %37 = tpu.matmul %34, %9, %cst_15 {dimension_numbers = #tpu.dot_dimension_numbers<[1], [0], [0], [1], [0, 0, 1, 1], [], []>} : vector<2x128xf32>, vector<128x128xf32>, vector<2x128xf32> -> vector<2x128xf32>
    %38 = arith.addf %36, %37 : vector<2x128xf32>
    %39 = math.tanh %38 : vector<2x128xf32>
    %40 = vector.extract_strided_slice %8 {offsets = [0, 6, 0], sizes = [2, 1, 128], strides = [1, 1, 1]} : vector<2x8x128xf32> to vector<2x1x128xf32>
    %41 = vector.shape_cast %40 : vector<2x1x128xf32> to vector<2x128xf32>
    %cst_16 = arith.constant dense<0.000000e+00> : vector<2x128xf32>
    %42 = tpu.matmul %39, %9, %cst_16 {dimension_numbers = #tpu.dot_dimension_numbers<[1], [0], [0], [1], [0, 0, 1, 1], [], []>} : vector<2x128xf32>, vector<128x128xf32>, vector<2x128xf32> -> vector<2x128xf32>
    %43 = arith.addf %41, %42 : vector<2x128xf32>
    %44 = math.tanh %43 : vector<2x128xf32>
    %45 = vector.extract_strided_slice %8 {offsets = [0, 7, 0], sizes = [2, 1, 128], strides = [1, 1, 1]} : vector<2x8x128xf32> to vector<2x1x128xf32>
    %46 = vector.shape_cast %45 : vector<2x1x128xf32> to vector<2x128xf32>
    %cst_17 = arith.constant dense<0.000000e+00> : vector<2x128xf32>
    %47 = tpu.matmul %44, %9, %cst_17 {dimension_numbers = #tpu.dot_dimension_numbers<[1], [0], [0], [1], [0, 0, 1, 1], [], []>} : vector<2x128xf32>, vector<128x128xf32>, vector<2x128xf32> -> vector<2x128xf32>
    %48 = arith.addf %46, %47 : vector<2x128xf32>
    %49 = math.tanh %48 : vector<2x128xf32>
    %50 = vector.shape_cast %14 : vector<2x128xf32> to vector<2x1x128xf32>
    %51 = vector.shape_cast %19 : vector<2x128xf32> to vector<2x1x128xf32>
    %52 = vector.shape_cast %24 : vector<2x128xf32> to vector<2x1x128xf32>
    %53 = vector.shape_cast %29 : vector<2x128xf32> to vector<2x1x128xf32>
    %54 = vector.shape_cast %34 : vector<2x128xf32> to vector<2x1x128xf32>
    %55 = vector.shape_cast %39 : vector<2x128xf32> to vector<2x1x128xf32>
    %56 = vector.shape_cast %44 : vector<2x128xf32> to vector<2x1x128xf32>
    %57 = vector.shape_cast %49 : vector<2x128xf32> to vector<2x1x128xf32>
    %58 = tpu.concatenate %50, %51, %52, %53, %54, %55, %56, %57 in 1 : vector<2x1x128xf32>, vector<2x1x128xf32>, vector<2x1x128xf32>, vector<2x1x128xf32>, vector<2x1x128xf32>, vector<2x1x128xf32>, vector<2x1x128xf32>, vector<2x1x128xf32> -> vector<2x8x128xf32>
    %c0_18 = arith.constant 0 : index
    %c0_19 = arith.constant 0 : index
    %59 = vector.load %arg6[%c0_18, %c0_19] : memref<128x128xf32, #tpu.memory_space<vmem>>, vector<128x128xf32>
    %c0_20 = arith.constant 0 : index
    %c0_21 = arith.constant 0 : index
    %c0_22 = arith.constant 0 : index
    %60 = vector.load %arg1[%c0_20, %c0_21, %c0_22] : memref<2x8x128xf32, #tpu.memory_space<vmem>>, vector<2x8x128xf32>
    %61 = vector.shape_cast %60 : vector<2x8x128xf32> to vector<16x128xf32>
    %cst_23 = arith.constant dense<0.000000e+00> : vector<16x128xf32>
    %62 = tpu.matmul %61, %59, %cst_23 {dimension_numbers = #tpu.dot_dimension_numbers<[1], [0], [0], [1], [0, 0, 1, 1], [], []>} : vector<16x128xf32>, vector<128x128xf32>, vector<16x128xf32> -> vector<16x128xf32>
    %c0_24 = arith.constant 0 : index
    %c0_25 = arith.constant 0 : index
    %63 = vector.load %arg8[%c0_24, %c0_25] : memref<1x128xf32, #tpu.memory_space<vmem>>, vector<1x128xf32>
    %64 = vector.broadcast %63 : vector<1x128xf32> to vector<16x128xf32>
    %65 = arith.addf %62, %64 : vector<16x128xf32>
    %66 = vector.shape_cast %65 : vector<16x128xf32> to vector<2x8x128xf32>
    %c0_26 = arith.constant 0 : index
    %c0_27 = arith.constant 0 : index
    %67 = vector.load %arg7[%c0_26, %c0_27] : memref<128x128xf32, #tpu.memory_space<vmem>>, vector<128x128xf32>
    %68 = vector.extract_strided_slice %66 {offsets = [0, 0, 0], sizes = [2, 1, 128], strides = [1, 1, 1]} : vector<2x8x128xf32> to vector<2x1x128xf32>
    %69 = vector.shape_cast %68 : vector<2x1x128xf32> to vector<2x128xf32>
    %cst_28 = arith.constant dense<0.000000e+00> : vector<2x128xf32>
    %70 = tpu.matmul %49, %67, %cst_28 {dimension_numbers = #tpu.dot_dimension_numbers<[1], [0], [0], [1], [0, 0, 1, 1], [], []>} : vector<2x128xf32>, vector<128x128xf32>, vector<2x128xf32> -> vector<2x128xf32>
    %71 = arith.addf %69, %70 : vector<2x128xf32>
    %72 = math.tanh %71 : vector<2x128xf32>
    %73 = vector.extract_strided_slice %66 {offsets = [0, 1, 0], sizes = [2, 1, 128], strides = [1, 1, 1]} : vector<2x8x128xf32> to vector<2x1x128xf32>
    %74 = vector.shape_cast %73 : vector<2x1x128xf32> to vector<2x128xf32>
    %cst_29 = arith.constant dense<0.000000e+00> : vector<2x128xf32>
    %75 = tpu.matmul %72, %67, %cst_29 {dimension_numbers = #tpu.dot_dimension_numbers<[1], [0], [0], [1], [0, 0, 1, 1], [], []>} : vector<2x128xf32>, vector<128x128xf32>, vector<2x128xf32> -> vector<2x128xf32>
    %76 = arith.addf %74, %75 : vector<2x128xf32>
    %77 = math.tanh %76 : vector<2x128xf32>
    %78 = vector.extract_strided_slice %66 {offsets = [0, 2, 0], sizes = [2, 1, 128], strides = [1, 1, 1]} : vector<2x8x128xf32> to vector<2x1x128xf32>
    %79 = vector.shape_cast %78 : vector<2x1x128xf32> to vector<2x128xf32>
    %cst_30 = arith.constant dense<0.000000e+00> : vector<2x128xf32>
    %80 = tpu.matmul %77, %67, %cst_30 {dimension_numbers = #tpu.dot_dimension_numbers<[1], [0], [0], [1], [0, 0, 1, 1], [], []>} : vector<2x128xf32>, vector<128x128xf32>, vector<2x128xf32> -> vector<2x128xf32>
    %81 = arith.addf %79, %80 : vector<2x128xf32>
    %82 = math.tanh %81 : vector<2x128xf32>
    %83 = vector.extract_strided_slice %66 {offsets = [0, 3, 0], sizes = [2, 1, 128], strides = [1, 1, 1]} : vector<2x8x128xf32> to vector<2x1x128xf32>
    %84 = vector.shape_cast %83 : vector<2x1x128xf32> to vector<2x128xf32>
    %cst_31 = arith.constant dense<0.000000e+00> : vector<2x128xf32>
    %85 = tpu.matmul %82, %67, %cst_31 {dimension_numbers = #tpu.dot_dimension_numbers<[1], [0], [0], [1], [0, 0, 1, 1], [], []>} : vector<2x128xf32>, vector<128x128xf32>, vector<2x128xf32> -> vector<2x128xf32>
    %86 = arith.addf %84, %85 : vector<2x128xf32>
    %87 = math.tanh %86 : vector<2x128xf32>
    %88 = vector.extract_strided_slice %66 {offsets = [0, 4, 0], sizes = [2, 1, 128], strides = [1, 1, 1]} : vector<2x8x128xf32> to vector<2x1x128xf32>
    %89 = vector.shape_cast %88 : vector<2x1x128xf32> to vector<2x128xf32>
    %cst_32 = arith.constant dense<0.000000e+00> : vector<2x128xf32>
    %90 = tpu.matmul %87, %67, %cst_32 {dimension_numbers = #tpu.dot_dimension_numbers<[1], [0], [0], [1], [0, 0, 1, 1], [], []>} : vector<2x128xf32>, vector<128x128xf32>, vector<2x128xf32> -> vector<2x128xf32>
    %91 = arith.addf %89, %90 : vector<2x128xf32>
    %92 = math.tanh %91 : vector<2x128xf32>
    %93 = vector.extract_strided_slice %66 {offsets = [0, 5, 0], sizes = [2, 1, 128], strides = [1, 1, 1]} : vector<2x8x128xf32> to vector<2x1x128xf32>
    %94 = vector.shape_cast %93 : vector<2x1x128xf32> to vector<2x128xf32>
    %cst_33 = arith.constant dense<0.000000e+00> : vector<2x128xf32>
    %95 = tpu.matmul %92, %67, %cst_33 {dimension_numbers = #tpu.dot_dimension_numbers<[1], [0], [0], [1], [0, 0, 1, 1], [], []>} : vector<2x128xf32>, vector<128x128xf32>, vector<2x128xf32> -> vector<2x128xf32>
    %96 = arith.addf %94, %95 : vector<2x128xf32>
    %97 = math.tanh %96 : vector<2x128xf32>
    %98 = vector.extract_strided_slice %66 {offsets = [0, 6, 0], sizes = [2, 1, 128], strides = [1, 1, 1]} : vector<2x8x128xf32> to vector<2x1x128xf32>
    %99 = vector.shape_cast %98 : vector<2x1x128xf32> to vector<2x128xf32>
    %cst_34 = arith.constant dense<0.000000e+00> : vector<2x128xf32>
    %100 = tpu.matmul %97, %67, %cst_34 {dimension_numbers = #tpu.dot_dimension_numbers<[1], [0], [0], [1], [0, 0, 1, 1], [], []>} : vector<2x128xf32>, vector<128x128xf32>, vector<2x128xf32> -> vector<2x128xf32>
    %101 = arith.addf %99, %100 : vector<2x128xf32>
    %102 = math.tanh %101 : vector<2x128xf32>
    %103 = vector.extract_strided_slice %66 {offsets = [0, 7, 0], sizes = [2, 1, 128], strides = [1, 1, 1]} : vector<2x8x128xf32> to vector<2x1x128xf32>
    %104 = vector.shape_cast %103 : vector<2x1x128xf32> to vector<2x128xf32>
    %cst_35 = arith.constant dense<0.000000e+00> : vector<2x128xf32>
    %105 = tpu.matmul %102, %67, %cst_35 {dimension_numbers = #tpu.dot_dimension_numbers<[1], [0], [0], [1], [0, 0, 1, 1], [], []>} : vector<2x128xf32>, vector<128x128xf32>, vector<2x128xf32> -> vector<2x128xf32>
    %106 = arith.addf %104, %105 : vector<2x128xf32>
    %107 = math.tanh %106 : vector<2x128xf32>
    %108 = vector.shape_cast %72 : vector<2x128xf32> to vector<2x1x128xf32>
    %109 = vector.shape_cast %77 : vector<2x128xf32> to vector<2x1x128xf32>
    %110 = vector.shape_cast %82 : vector<2x128xf32> to vector<2x1x128xf32>
    %111 = vector.shape_cast %87 : vector<2x128xf32> to vector<2x1x128xf32>
    %112 = vector.shape_cast %92 : vector<2x128xf32> to vector<2x1x128xf32>
    %113 = vector.shape_cast %97 : vector<2x128xf32> to vector<2x1x128xf32>
    %114 = vector.shape_cast %102 : vector<2x128xf32> to vector<2x1x128xf32>
    %115 = vector.shape_cast %107 : vector<2x128xf32> to vector<2x1x128xf32>
    %116 = tpu.concatenate %108, %109, %110, %111, %112, %113, %114, %115 in 1 : vector<2x1x128xf32>, vector<2x1x128xf32>, vector<2x1x128xf32>, vector<2x1x128xf32>, vector<2x1x128xf32>, vector<2x1x128xf32>, vector<2x1x128xf32>, vector<2x1x128xf32> -> vector<2x8x128xf32>
    "tpu.trace_start"() <{level = 10 : i32, message = "bth,bsh->bts"}> : () -> ()
    %cst_36 = arith.constant dense<0.000000e+00> : vector<2x8x8xf32>
    %117 = tpu.matmul %116, %58, %cst_36 {dimension_numbers = #tpu.dot_dimension_numbers<[2], [2], [1], [1], [0, 0, 0, 1, 1, 1], [0], [0]>} : vector<2x8x128xf32>, vector<2x8x128xf32>, vector<2x8x8xf32> -> vector<2x8x8xf32>
    "tpu.trace_stop"() : () -> ()
    %cst_37 = arith.constant dense<0xFF800000> : vector<2x8xf32>
    %118 = vector.multi_reduction <maximumf>, %117, %cst_37 [2] : vector<2x8x8xf32> to vector<2x8xf32>
    %119 = vector.shape_cast %118 : vector<2x8xf32> to vector<2x8x1xf32>
    %120 = vector.broadcast %119 : vector<2x8x1xf32> to vector<2x8x8xf32>
    %121 = arith.subf %117, %120 : vector<2x8x8xf32>
    %122 = math.exp %121 : vector<2x8x8xf32>
    %cst_38 = arith.constant dense<0.000000e+00> : vector<2x8xf32>
    %123 = vector.multi_reduction <add>, %122, %cst_38 [2] : vector<2x8x8xf32> to vector<2x8xf32>
    %124 = vector.shape_cast %123 : vector<2x8xf32> to vector<2x8x1xf32>
    %125 = tpu.reciprocal %124 : vector<2x8x1xf32> -> vector<2x8x1xf32>
    %126 = vector.broadcast %125 : vector<2x8x1xf32> to vector<2x8x8xf32>
    %127 = arith.mulf %122, %126 : vector<2x8x8xf32>
    %c0_39 = arith.constant 0 : index
    %c0_40 = arith.constant 0 : index
    %c0_41 = arith.constant 0 : index
    %128 = vector.load %arg13[%c0_39, %c0_40, %c0_41] : memref<2x8x8xf32, #tpu.memory_space<vmem>>, vector<2x8x8xf32>
    tpu.vector_store %arg13[%c0_39, %c0_40, %c0_41], %127 {strides = array<i32>} : memref<2x8x8xf32, #tpu.memory_space<vmem>>, vector<2x8x8xf32>,
    "tpu.trace_start"() <{level = 10 : i32, message = "bts,bsh->bth"}> : () -> ()
    %cst_42 = arith.constant dense<0.000000e+00> : vector<2x8x128xf32>
    %129 = tpu.matmul %127, %58, %cst_42 {dimension_numbers = #tpu.dot_dimension_numbers<[2], [1], [1], [2], [0, 0, 0, 1, 1, 2], [0], [0]>} : vector<2x8x8xf32>, vector<2x8x128xf32>, vector<2x8x128xf32> -> vector<2x8x128xf32>
    "tpu.trace_stop"() : () -> ()
    %130 = vector.shape_cast %116 : vector<2x8x128xf32> to vector<16x128xf32>
    %c0_43 = arith.constant 0 : index
    %c0_44 = arith.constant 0 : index
    %131 = vector.load %arg9[%c0_43, %c0_44] : memref<128x128xf32, #tpu.memory_space<vmem>>, vector<128x128xf32>
    %cst_45 = arith.constant dense<0.000000e+00> : vector<16x128xf32>
    %132 = tpu.matmul %130, %131, %cst_45 {dimension_numbers = #tpu.dot_dimension_numbers<[1], [0], [0], [1], [0, 0, 1, 1], [], []>} : vector<16x128xf32>, vector<128x128xf32>, vector<16x128xf32> -> vector<16x128xf32>
    %133 = vector.shape_cast %129 : vector<2x8x128xf32> to vector<16x128xf32>
    %c0_46 = arith.constant 0 : index
    %c0_47 = arith.constant 0 : index
    %134 = vector.load %arg10[%c0_46, %c0_47] : memref<128x128xf32, #tpu.memory_space<vmem>>, vector<128x128xf32>
    %cst_48 = arith.constant dense<0.000000e+00> : vector<16x128xf32>
    %135 = tpu.matmul %133, %134, %cst_48 {dimension_numbers = #tpu.dot_dimension_numbers<[1], [0], [0], [1], [0, 0, 1, 1], [], []>} : vector<16x128xf32>, vector<128x128xf32>, vector<16x128xf32> -> vector<16x128xf32>
    %136 = arith.addf %132, %135 : vector<16x128xf32>
    %c0_49 = arith.constant 0 : index
    %c0_50 = arith.constant 0 : index
    %137 = vector.load %arg11[%c0_49, %c0_50] : memref<1x128xf32, #tpu.memory_space<vmem>>, vector<1x128xf32>
    %138 = vector.broadcast %137 : vector<1x128xf32> to vector<16x128xf32>
    %139 = arith.addf %136, %138 : vector<16x128xf32>
    %c0_51 = arith.constant 0 : index
    %c0_52 = arith.constant 0 : index
    %140 = vector.load %arg12[%c0_51, %c0_52] : memref<16x128xf32, #tpu.memory_space<vmem>>, vector<16x128xf32>
    tpu.vector_store %arg12[%c0_51, %c0_52], %139 {strides = array<i32>} : memref<16x128xf32, #tpu.memory_space<vmem>>, vector<16x128xf32>,
    return
  }
}

</mosaic_0001>

<llo_original>
// kernel: seq2seq_forward.1
$region0: #{seq2seq_forward.1}
  #allocation0 [shape = 'u32[]', space=smem, size = 0x4, offset = 0x4, fixed_abs, tag = 'smem constant byte address 0x4 - core index']
  #allocation1 [shape = 'u32[72,128]{1,0:T(1,128)}', space=vmem, size = 0x9000, scoped, tag = 'internal scratch']
  %s0 = inlined_call_operand.vmem [shape: f32[2,8,128], index: 0, kind: input, shape index: {}]
  %s1 = inlined_call_operand.vmem [shape: f32[2,8,128], index: 1, kind: input, shape index: {}]
  %s2 = inlined_call_operand.vmem [shape: f32[2,128], index: 2, kind: input, shape index: {}]
  %s3 = inlined_call_operand.vmem [shape: f32[128,128], index: 3, kind: input, shape index: {}]
  %s4 = inlined_call_operand.vmem [shape: f32[128,128], index: 4, kind: input, shape index: {}]
  %s5 = inlined_call_operand.vmem [shape: f32[1,128], index: 5, kind: input, shape index: {}]
  %s6 = inlined_call_operand.vmem [shape: f32[128,128], index: 6, kind: input, shape index: {}]
  %s7 = inlined_call_operand.hbm [shape: f32[128,128], index: 7, kind: input, shape index: {}]
  %s8 = inlined_call_operand.vmem [shape: f32[1,128], index: 8, kind: input, shape index: {}]
  %s9 = inlined_call_operand.hbm [shape: f32[128,128], index: 9, kind: input, shape index: {}]
  %s10 = inlined_call_operand.hbm [shape: f32[128,128], index: 10, kind: input, shape index: {}]
  %s11 = inlined_call_operand.vmem [shape: f32[1,128], index: 11, kind: input, shape index: {}]
  %s12 = inlined_call_operand.vmem [shape: f32[16,128], index: 12, kind: output, shape index: {0}]
  %s13 = inlined_call_operand.vmem [shape: f32[2,8,8], index: 13, kind: output, shape index: {1}]
  %14 = xla_tuple %s12, %s13
  %s15 = sld [smem:[#allocation0]]
  $region78: #{seq2seq_forward.1} parent=0
    _
  %s17 = ssub.s32 1, %s15
  %s18 = scalar_select 0, %s17, %s15
  $region1: #{seq2seq_forward.1} parent=0
    #allocation2 [shape = 'u8[65536]{0}', space=vmem, size = 0x10000, scoped, tag = 'input window, operand 7, single buffered']
    #allocation3 [shape = 's32[1]{0}', space=sflag, size = 0x4, scoped, tag = 'scoped memory for seq2seq_forward.1']
    #allocation4 [shape = 'u8[65536]{0}', space=vmem, size = 0x10000, scoped, tag = 'input window, operand 9, single buffered']
    #allocation5 [shape = 's32[1]{0}', space=sflag, size = 0x4, scoped, tag = 'scoped memory for seq2seq_forward.1']
    #allocation6 [shape = 'u8[65536]{0}', space=vmem, size = 0x10000, scoped, tag = 'input window, operand 10, single buffered']
    %19 = vsyncpa [#allocation3], 0
    %20 = vsyncpa [#allocation5], 0
    // Predicated region
    $region2: #{seq2seq_forward.1} parent=1 // pred_check
      _
    $region3: #{seq2seq_forward.1} parent=1 // pred_check_branch
      %22 = sbr.rel (0) target = $region5
    $region4: #{seq2seq_forward.1} parent=1 // pred_region
      _
    $region5: #{seq2seq_forward.1} parent=1 // pred_fallthru
      _
    // Predicated region
    $region6: #{seq2seq_forward.1} parent=1 // pred_check
      _
    $region7: #{seq2seq_forward.1} parent=1 // pred_check_branch
      %24 = sbr.rel (0) target = $region9
    $region8: #{seq2seq_forward.1} parent=1 // pred_region
      _
    $region9: #{seq2seq_forward.1} parent=1 // pred_fallthru
      _
    // Predicated region
    $region10: #{seq2seq_forward.1} parent=1 // pred_check
      _
    $region11: #{seq2seq_forward.1} parent=1 // pred_check_branch
      %26 = sbr.rel (0) target = $region13
    $region12: #{seq2seq_forward.1} parent=1 // pred_region
      _
    $region13: #{seq2seq_forward.1} parent=1 // pred_fallthru
      _
    // Predicated region
    $region14: #{seq2seq_forward.1} parent=1 // pred_check
      _
    $region15: #{seq2seq_forward.1} parent=1 // pred_check_branch
      %28 = sbr.rel (0) target = $region17
    $region16: #{seq2seq_forward.1} parent=1 // pred_region
      _
    $region17: #{seq2seq_forward.1} parent=1 // pred_fallthru
      _
    // Predicated region
    $region18: #{seq2seq_forward.1} parent=1 // pred_check
      _
    $region19: #{seq2seq_forward.1} parent=1 // pred_check_branch
      %30 = sbr.rel (0) target = $region21
    $region20: #{seq2seq_forward.1} parent=1 // pred_region
      _
    $region21: #{seq2seq_forward.1} parent=1 // pred_fallthru
      _
    // Predicated region
    $region22: #{seq2seq_forward.1} parent=1 // pred_check
      _
    $region23: #{seq2seq_forward.1} parent=1 // pred_check_branch
      %32 = sbr.rel (0) target = $region25
    $region24: #{seq2seq_forward.1} parent=1 // pred_region
      _
    $region25: #{seq2seq_forward.1} parent=1 // pred_fallthru
      _
    // Predicated region
    $region26: #{seq2seq_forward.1} parent=1 // pred_check
      _
    $region27: #{seq2seq_forward.1} parent=1 // pred_check_branch
      %34 = sbr.rel (0) target = $region29
    $region28: #{seq2seq_forward.1} parent=1 // pred_region
      _
    $region29: #{seq2seq_forward.1} parent=1 // pred_fallthru
      _
    // Predicated region
    $region30: #{seq2seq_forward.1} parent=1 // pred_check
      _
    $region31: #{seq2seq_forward.1} parent=1 // pred_check_branch
      %36 = sbr.rel (0) target = $region33
    $region32: #{seq2seq_forward.1} parent=1 // pred_region
      %38 = vsyncadd [#allocation3], 0
      %s39 = sshll.u32 %s7, 4
      %s40 = int_to_ptr.hbm [resolvable:$true] %s39
      %s41 = sshll.u32 [#allocation2], 4
      %s42 = int_to_ptr.vmem [resolvable:$true] %s41
      %47 = dma.hbm_to_vmem [thread:$0]  %s40, 2048, %s42, [#allocation3], 128, 128, 8
    $region33: #{seq2seq_forward.1} parent=1 // pred_fallthru
      _
    // Predicated region
    $region34: #{seq2seq_forward.1} parent=1 // pred_check
      _
    $region35: #{seq2seq_forward.1} parent=1 // pred_check_branch
      %49 = sbr.rel (0) target = $region37
    $region36: #{seq2seq_forward.1} parent=1 // pred_region
      _
    $region37: #{seq2seq_forward.1} parent=1 // pred_fallthru
      _
    // Predicated region
    $region38: #{seq2seq_forward.1} parent=1 // pred_check
      _
    $region39: #{seq2seq_forward.1} parent=1 // pred_check_branch
      %51 = sbr.rel (0) target = $region41
    $region40: #{seq2seq_forward.1} parent=1 // pred_region
      %53 = vsyncadd [#allocation5], 0
      %s54 = sshll.u32 %s9, 4
      %s55 = int_to_ptr.hbm [resolvable:$true] %s54
      %s56 = sshll.u32 [#allocation4], 4
      %s57 = int_to_ptr.vmem [resolvable:$true] %s56
      %62 = dma.hbm_to_vmem [thread:$0]  %s55, 2048, %s57, [#allocation5], 128, 128, 8
    $region41: #{seq2seq_forward.1} parent=1 // pred_fallthru
      _
    // Predicated region
    $region42: #{seq2seq_forward.1} parent=1 // pred_check
      _
    $region43: #{seq2seq_forward.1} parent=1 // pred_check_branch
      %64 = sbr.rel (0) target = $region45
    $region44: #{seq2seq_forward.1} parent=1 // pred_region
      %66 = vsyncadd [#allocation5], 0
      %s67 = sshll.u32 %s10, 4
      %s68 = int_to_ptr.hbm [resolvable:$true] %s67
      %s69 = sshll.u32 [#allocation6], 4
      %s70 = int_to_ptr.vmem [resolvable:$true] %s69
      %75 = dma.hbm_to_vmem [thread:$0]  %s68, 2048, %s70, [#allocation5], 128, 128, 8
    $region45: #{seq2seq_forward.1} parent=1 // pred_fallthru
      _
    // Predicated region
    $region46: #{seq2seq_forward.1} parent=1 // pred_check
      _
    $region47: #{seq2seq_forward.1} parent=1 // pred_check_branch
      %77 = sbr.rel (0) target = $region49
    $region48: #{seq2seq_forward.1} parent=1 // pred_region
      _
    $region49: #{seq2seq_forward.1} parent=1 // pred_fallthru
      _
    // Predicated region
    $region50: #{seq2seq_forward.1} parent=1 // pred_check
      _
    $region51: #{seq2seq_forward.1} parent=1 // pred_check_branch
      %79 = sbr.rel (0) target = $region53
    $region52: #{seq2seq_forward.1} parent=1 // pred_region
      %81 = dma.done [#allocation3], 2048
    $region53: #{seq2seq_forward.1} parent=1 // pred_fallthru
      _
    // Predicated region
    $region54: #{seq2seq_forward.1} parent=1 // pred_check
      _
    $region55: #{seq2seq_forward.1} parent=1 // pred_check_branch
      %83 = sbr.rel (0) target = $region57
    $region56: #{seq2seq_forward.1} parent=1 // pred_region
      %85 = dma.done [#allocation5], 2048
    $region57: #{seq2seq_forward.1} parent=1 // pred_fallthru
      _
    // Predicated region
    $region58: #{seq2seq_forward.1} parent=1 // pred_check
      _
    $region59: #{seq2seq_forward.1} parent=1 // pred_check_branch
      %87 = sbr.rel (0) target = $region61
    $region60: #{seq2seq_forward.1} parent=1 // pred_region
      %89 = dma.done [#allocation5], 2048
    $region61: #{seq2seq_forward.1} parent=1 // pred_fallthru
      _
    %v90 = vld [vmem:[%s2] sm:$0x3]
    %v91 = vld [vmem:[%s3] sm:$0xff]
    %v92 = vld [vmem:[%s3 + $0x8] sm:$0xff]
    %v93 = vld [vmem:[%s3 + $0x10] sm:$0xff]
    %v94 = vld [vmem:[%s3 + $0x18] sm:$0xff]
    %v95 = vld [vmem:[%s3 + $0x20] sm:$0xff]
    %v96 = vld [vmem:[%s3 + $0x28] sm:$0xff]
    %v97 = vld [vmem:[%s3 + $0x30] sm:$0xff]
    %v98 = vld [vmem:[%s3 + $0x38] sm:$0xff]
    %v99 = vld [vmem:[%s3 + $0x40] sm:$0xff]
    %v100 = vld [vmem:[%s3 + $0x48] sm:$0xff]
    %v101 = vld [vmem:[%s3 + $0x50] sm:$0xff]
    %v102 = vld [vmem:[%s3 + $0x58] sm:$0xff]
    %v103 = vld [vmem:[%s3 + $0x60] sm:$0xff]
    %v104 = vld [vmem:[%s3 + $0x68] sm:$0xff]
    %v105 = vld [vmem:[%s3 + $0x70] sm:$0xff]
    %v106 = vld [vmem:[%s3 + $0x78] sm:$0xff]
    %v107 = vld [vmem:[%s0] sm:$0xff]
    %v108 = vld [vmem:[%s0 + $0x8] sm:$0xff]
    %v109 = vld [vmem:[%s5] sm:$0x1]
    %v111 = vperm.slane %v109, 0
    %113 = vmatpush.msra.mxu0 %v106
    %114 = vmatpush.msra.mxu0 %v105
    %115 = vmatpush.msra.mxu0 %v104
    %116 = vmatpush.msra.mxu0 %v103
    %117 = vmatpush.msra.mxu0 %v102
    %118 = vmatpush.msra.mxu0 %v101
    %119 = vmatpush.msra.mxu0 %v100
    %120 = vmatpush.msra.mxu0 %v99
    %121 = vmatpush.msra.mxu0 %v98
    %122 = vmatpush.msra.mxu0 %v97
    %123 = vmatpush.msra.mxu0 %v96
    %124 = vmatpush.msra.mxu0 %v95
    %125 = vmatpush.msra.mxu0 %v94
    %126 = vmatpush.msra.mxu0 %v93
    %127 = vmatpush.msra.mxu0 %v92
    %128 = vmatpush.msra.mxu0 %v91
    %129 = vmatmul.f32.gmra.mxu0 %v107
    %v130 = vpop.f32.mrf.mxu0
    %v131 = vadd.f32 %v111, %v130
    %132 = vmatmul.f32.gmra.mxu0 %v108
    %v133 = vpop.f32.mrf.mxu0
    %v134 = vadd.f32 %v111, %v133
    %135 = vdwg.mxu0
    %v136 = vld [vmem:[%s4] sm:$0xff]
    %v137 = vld [vmem:[%s4 + $0x8] sm:$0xff]
    %v138 = vld [vmem:[%s4 + $0x10] sm:$0xff]
    %v139 = vld [vmem:[%s4 + $0x18] sm:$0xff]
    %v140 = vld [vmem:[%s4 + $0x20] sm:$0xff]
    %v141 = vld [vmem:[%s4 + $0x28] sm:$0xff]
    %v142 = vld [vmem:[%s4 + $0x30] sm:$0xff]
    %v143 = vld [vmem:[%s4 + $0x38] sm:$0xff]
    %v144 = vld [vmem:[%s4 + $0x40] sm:$0xff]
    %v145 = vld [vmem:[%s4 + $0x48] sm:$0xff]
    %v146 = vld [vmem:[%s4 + $0x50] sm:$0xff]
    %v147 = vld [vmem:[%s4 + $0x58] sm:$0xff]
    %v148 = vld [vmem:[%s4 + $0x60] sm:$0xff]
    %v149 = vld [vmem:[%s4 + $0x68] sm:$0xff]
    %v150 = vld [vmem:[%s4 + $0x70] sm:$0xff]
    %v151 = vld [vmem:[%s4 + $0x78] sm:$0xff]
    %152 = vmatpush.msra.mxu0 %v151
    %153 = vmatpush.msra.mxu0 %v150
    %154 = vmatpush.msra.mxu0 %v149
    %155 = vmatpush.msra.mxu0 %v148
    %156 = vmatpush.msra.mxu0 %v147
    %157 = vmatpush.msra.mxu0 %v146
    %158 = vmatpush.msra.mxu0 %v145
    %159 = vmatpush.msra.mxu0 %v144
    %160 = vmatpush.msra.mxu0 %v143
    %161 = vmatpush.msra.mxu0 %v142
    %162 = vmatpush.msra.mxu0 %v141
    %163 = vmatpush.msra.mxu0 %v140
    %164 = vmatpush.msra.mxu0 %v139
    %165 = vmatpush.msra.mxu0 %v138
    %166 = vmatpush.msra.mxu0 %v137
    %167 = vmatpush.msra.mxu0 %v136
    %168 = vmatmul.f32.gmra.mxu0 %v90
    %v169 = vpop.f32.mrf.mxu0
    %v170 = vadd.f32 0.0, %v169
    %171 = vdwg.mxu0
    %v173 = vrot.slane %v170, 1
    %v176 = vadd.f32 %v131, %v170
    %v177 = vadd.f32 %v134, %v173
    %v178 = vtanh.pop %v176
    %v179 = vtanh.pop %v177
    %v182 = vrot.slane %v179, 7
    %vm183 = vcmask 1041409
    %v184 = vsel %vm183, %v182, %v178
    %186 = vmatpush.msra.mxu0 %v151
    %187 = vmatpush.msra.mxu0 %v150
    %188 = vmatpush.msra.mxu0 %v149
    %189 = vmatpush.msra.mxu0 %v148
    %190 = vmatpush.msra.mxu0 %v147
    %191 = vmatpush.msra.mxu0 %v146
    %192 = vmatpush.msra.mxu0 %v145
    %193 = vmatpush.msra.mxu0 %v144
    %194 = vmatpush.msra.mxu0 %v143
    %195 = vmatpush.msra.mxu0 %v142
    %196 = vmatpush.msra.mxu0 %v141
    %197 = vmatpush.msra.mxu0 %v140
    %198 = vmatpush.msra.mxu0 %v139
    %199 = vmatpush.msra.mxu0 %v138
    %200 = vmatpush.msra.mxu0 %v137
    %201 = vmatpush.msra.mxu0 %v136
    %202 = vmatmul.f32.gmra.mxu0 %v184
    %v203 = vpop.f32.mrf.mxu0
    %v204 = vadd.f32 0.0, %v203
    %205 = vdwg.mxu0
    %v207 = vrot.slane %v204, 7
    %v210 = vadd.f32 %v131, %v207
    %v211 = vadd.f32 %v134, %v204
    %v212 = vtanh.pop %v210
    %v213 = vtanh.pop %v211
    %v216 = vrot.slane %v212, 1
    %v217 = vsel %vm183, %v213, %v216
    %219 = vmatpush.msra.mxu0 %v151
    %220 = vmatpush.msra.mxu0 %v150
    %221 = vmatpush.msra.mxu0 %v149
    %222 = vmatpush.msra.mxu0 %v148
    %223 = vmatpush.msra.mxu0 %v147
    %224 = vmatpush.msra.mxu0 %v146
    %225 = vmatpush.msra.mxu0 %v145
    %226 = vmatpush.msra.mxu0 %v144
    %227 = vmatpush.msra.mxu0 %v143
    %228 = vmatpush.msra.mxu0 %v142
    %229 = vmatpush.msra.mxu0 %v141
    %230 = vmatpush.msra.mxu0 %v140
    %231 = vmatpush.msra.mxu0 %v139
    %232 = vmatpush.msra.mxu0 %v138
    %233 = vmatpush.msra.mxu0 %v137
    %234 = vmatpush.msra.mxu0 %v136
    %235 = vmatmul.f32.gmra.mxu0 %v217
    %v236 = vpop.f32.mrf.mxu0
    %v237 = vadd.f32 0.0, %v236
    %238 = vdwg.mxu0
    %v240 = vrot.slane %v237, 6
    %v241 = vrot.slane %v237, 7
    %v244 = vadd.f32 %v131, %v240
    %v245 = vadd.f32 %v134, %v241
    %v246 = vtanh.pop %v244
    %v247 = vtanh.pop %v245
    %v250 = vrot.slane %v246, 2
    %v251 = vrot.slane %v247, 1
    %v252 = vsel %vm183, %v251, %v250
    %254 = vmatpush.msra.mxu0 %v151
    %255 = vmatpush.msra.mxu0 %v150
    %256 = vmatpush.msra.mxu0 %v149
    %257 = vmatpush.msra.mxu0 %v148
    %258 = vmatpush.msra.mxu0 %v147
    %259 = vmatpush.msra.mxu0 %v146
    %260 = vmatpush.msra.mxu0 %v145
    %261 = vmatpush.msra.mxu0 %v144
    %262 = vmatpush.msra.mxu0 %v143
    %263 = vmatpush.msra.mxu0 %v142
    %264 = vmatpush.msra.mxu0 %v141
    %265 = vmatpush.msra.mxu0 %v140
    %266 = vmatpush.msra.mxu0 %v139
    %267 = vmatpush.msra.mxu0 %v138
    %268 = vmatpush.msra.mxu0 %v137
    %269 = vmatpush.msra.mxu0 %v136
    %270 = vmatmul.f32.gmra.mxu0 %v252
    %v271 = vpop.f32.mrf.mxu0
    %v272 = vadd.f32 0.0, %v271
    %273 = vdwg.mxu0
    %v275 = vrot.slane %v272, 5
    %v276 = vrot.slane %v272, 6
    %v279 = vadd.f32 %v131, %v275
    %v280 = vadd.f32 %v134, %v276
    %v281 = vtanh.pop %v279
    %v282 = vtanh.pop %v280
    %v285 = vrot.slane %v281, 3
    %v286 = vrot.slane %v282, 2
    %v287 = vsel %vm183, %v286, %v285
    %289 = vmatpush.msra.mxu0 %v151
    %290 = vmatpush.msra.mxu0 %v150
    %291 = vmatpush.msra.mxu0 %v149
    %292 = vmatpush.msra.mxu0 %v148
    %293 = vmatpush.msra.mxu0 %v147
    %294 = vmatpush.msra.mxu0 %v146
    %295 = vmatpush.msra.mxu0 %v145
    %296 = vmatpush.msra.mxu0 %v144
    %297 = vmatpush.msra.mxu0 %v143
    %298 = vmatpush.msra.mxu0 %v142
    %299 = vmatpush.msra.mxu0 %v141
    %300 = vmatpush.msra.mxu0 %v140
    %301 = vmatpush.msra.mxu0 %v139
    %302 = vmatpush.msra.mxu0 %v138
    %303 = vmatpush.msra.mxu0 %v137
    %304 = vmatpush.msra.mxu0 %v136
    %305 = vmatmul.f32.gmra.mxu0 %v287
    %v306 = vpop.f32.mrf.mxu0
    %v307 = vadd.f32 0.0, %v306
    %308 = vdwg.mxu0
    %v310 = vrot.slane %v307, 4
    %v311 = vrot.slane %v307, 5
    %v314 = vadd.f32 %v131, %v310
    %v315 = vadd.f32 %v134, %v311
    %v316 = vtanh.pop %v314
    %v317 = vtanh.pop %v315
    %v320 = vrot.slane %v316, 4
    %v321 = vrot.slane %v317, 3
    %v322 = vsel %vm183, %v321, %v320
    %324 = vmatpush.msra.mxu0 %v151
    %325 = vmatpush.msra.mxu0 %v150
    %326 = vmatpush.msra.mxu0 %v149
    %327 = vmatpush.msra.mxu0 %v148
    %328 = vmatpush.msra.mxu0 %v147
    %329 = vmatpush.msra.mxu0 %v146
    %330 = vmatpush.msra.mxu0 %v145
    %331 = vmatpush.msra.mxu0 %v144
    %332 = vmatpush.msra.mxu0 %v143
    %333 = vmatpush.msra.mxu0 %v142
    %334 = vmatpush.msra.mxu0 %v141
    %335 = vmatpush.msra.mxu0 %v140
    %336 = vmatpush.msra.mxu0 %v139
    %337 = vmatpush.msra.mxu0 %v138
    %338 = vmatpush.msra.mxu0 %v137
    %339 = vmatpush.msra.mxu0 %v136
    %340 = vmatmul.f32.gmra.mxu0 %v322
    %v341 = vpop.f32.mrf.mxu0
    %v342 = vadd.f32 0.0, %v341
    %343 = vdwg.mxu0
    %v345 = vrot.slane %v342, 3
    %v346 = vrot.slane %v342, 4
    %v349 = vadd.f32 %v131, %v345
    %v350 = vadd.f32 %v134, %v346
    %v351 = vtanh.pop %v349
    %v352 = vtanh.pop %v350
    %v355 = vrot.slane %v351, 5
    %v356 = vrot.slane %v352, 4
    %v357 = vsel %vm183, %v356, %v355
    %359 = vmatpush.msra.mxu0 %v151
    %360 = vmatpush.msra.mxu0 %v150
    %361 = vmatpush.msra.mxu0 %v149
    %362 = vmatpush.msra.mxu0 %v148
    %363 = vmatpush.msra.mxu0 %v147
    %364 = vmatpush.msra.mxu0 %v146
    %365 = vmatpush.msra.mxu0 %v145
    %366 = vmatpush.msra.mxu0 %v144
    %367 = vmatpush.msra.mxu0 %v143
    %368 = vmatpush.msra.mxu0 %v142
    %369 = vmatpush.msra.mxu0 %v141
    %370 = vmatpush.msra.mxu0 %v140
    %371 = vmatpush.msra.mxu0 %v139
    %372 = vmatpush.msra.mxu0 %v138
    %373 = vmatpush.msra.mxu0 %v137
    %374 = vmatpush.msra.mxu0 %v136
    %375 = vmatmul.f32.gmra.mxu0 %v357
    %v376 = vpop.f32.mrf.mxu0
    %v377 = vadd.f32 0.0, %v376
    %378 = vdwg.mxu0
    %v380 = vrot.slane %v377, 2
    %v381 = vrot.slane %v377, 3
    %v384 = vadd.f32 %v131, %v380
    %v385 = vadd.f32 %v134, %v381
    %v386 = vtanh.pop %v384
    %v387 = vtanh.pop %v385
    %v390 = vrot.slane %v386, 6
    %v391 = vrot.slane %v387, 5
    %v392 = vsel %vm183, %v391, %v390
    %394 = vmatpush.msra.mxu0 %v151
    %395 = vmatpush.msra.mxu0 %v150
    %396 = vmatpush.msra.mxu0 %v149
    %397 = vmatpush.msra.mxu0 %v148
    %398 = vmatpush.msra.mxu0 %v147
    %399 = vmatpush.msra.mxu0 %v146
    %400 = vmatpush.msra.mxu0 %v145
    %401 = vmatpush.msra.mxu0 %v144
    %402 = vmatpush.msra.mxu0 %v143
    %403 = vmatpush.msra.mxu0 %v142
    %404 = vmatpush.msra.mxu0 %v141
    %405 = vmatpush.msra.mxu0 %v140
    %406 = vmatpush.msra.mxu0 %v139
    %407 = vmatpush.msra.mxu0 %v138
    %408 = vmatpush.msra.mxu0 %v137
    %409 = vmatpush.msra.mxu0 %v136
    %410 = vmatmul.f32.gmra.mxu0 %v392
    %v411 = vpop.f32.mrf.mxu0
    %v412 = vadd.f32 0.0, %v411
    %413 = vdwg.mxu0
    %v415 = vrot.slane %v412, 1
    %v416 = vrot.slane %v412, 2
    %v419 = vadd.f32 %v131, %v415
    %v420 = vadd.f32 %v134, %v416
    %v421 = vtanh.pop %v419
    %v422 = vtanh.pop %v420
    %vm423 = vcmask 1040384
    %v424 = vsel %vm423, %v178, %v212
    %v425 = vsel %vm423, %v179, %v213
    %vm426 = vcmask 1041408
    %v427 = vsel %vm426, %v424, %v246
    %v428 = vsel %vm426, %v425, %v247
    %vm429 = vcmask 1042432
    %v430 = vsel %vm429, %v427, %v281
    %v431 = vsel %vm429, %v428, %v282
    %vm432 = vcmask 1043456
    %v433 = vsel %vm432, %v430, %v316
    %v434 = vsel %vm432, %v431, %v317
    %vm435 = vcmask 1044480
    %v436 = vsel %vm435, %v433, %v351
    %v437 = vsel %vm435, %v434, %v352
    %vm438 = vcmask 1045504
    %v439 = vsel %vm438, %v436, %v386
    %v440 = vsel %vm438, %v437, %v387
    %vm441 = vcmask 1046528
    %v442 = vsel %vm441, %v439, %v421
    %v443 = vsel %vm441, %v440, %v422
    %v444 = vld [vmem:[%s6] sm:$0xff]
    %v445 = vld [vmem:[%s6 + $0x8] sm:$0xff]
    %v446 = vld [vmem:[%s6 + $0x10] sm:$0xff]
    %v447 = vld [vmem:[%s6 + $0x18] sm:$0xff]
    %v448 = vld [vmem:[%s6 + $0x20] sm:$0xff]
    %v449 = vld [vmem:[%s6 + $0x28] sm:$0xff]
    %v450 = vld [vmem:[%s6 + $0x30] sm:$0xff]
    %v451 = vld [vmem:[%s6 + $0x38] sm:$0xff]
    %v452 = vld [vmem:[%s6 + $0x40] sm:$0xff]
    %v453 = vld [vmem:[%s6 + $0x48] sm:$0xff]
    %v454 = vld [vmem:[%s6 + $0x50] sm:$0xff]
    %v455 = vld [vmem:[%s6 + $0x58] sm:$0xff]
    %v456 = vld [vmem:[%s6 + $0x60] sm:$0xff]
    %v457 = vld [vmem:[%s6 + $0x68] sm:$0xff]
    %v458 = vld [vmem:[%s6 + $0x70] sm:$0xff]
    %v459 = vld [vmem:[%s6 + $0x78] sm:$0xff]
    %v460 = vld [vmem:[%s1] sm:$0xff]
    %v461 = vld [vmem:[%s1 + $0x8] sm:$0xff]
    %v462 = vld [vmem:[%s8] sm:$0x1]
    %v464 = vperm.slane %v462, 0
    %466 = vmatpush.msra.mxu0 %v459
    %467 = vmatpush.msra.mxu0 %v458
    %468 = vmatpush.msra.mxu0 %v457
    %469 = vmatpush.msra.mxu0 %v456
    %470 = vmatpush.msra.mxu0 %v455
    %471 = vmatpush.msra.mxu0 %v454
    %472 = vmatpush.msra.mxu0 %v453
    %473 = vmatpush.msra.mxu0 %v452
    %474 = vmatpush.msra.mxu0 %v451
    %475 = vmatpush.msra.mxu0 %v450
    %476 = vmatpush.msra.mxu0 %v449
    %477 = vmatpush.msra.mxu0 %v448
    %478 = vmatpush.msra.mxu0 %v447
    %479 = vmatpush.msra.mxu0 %v446
    %480 = vmatpush.msra.mxu0 %v445
    %481 = vmatpush.msra.mxu0 %v444
    %482 = vmatmul.f32.gmra.mxu0 %v460
    %v483 = vpop.f32.mrf.mxu0
    %v484 = vadd.f32 %v464, %v483
    %485 = vmatmul.f32.gmra.mxu0 %v461
    %v486 = vpop.f32.mrf.mxu0
    %v487 = vadd.f32 %v464, %v486
    %488 = vdwg.mxu0
    %v489 = vld [vmem:[#allocation2] sm:$0xff]
    %v490 = vld [vmem:[#allocation2 + $0x8] sm:$0xff]
    %v491 = vld [vmem:[#allocation2 + $0x10] sm:$0xff]
    %v492 = vld [vmem:[#allocation2 + $0x18] sm:$0xff]
    %v493 = vld [vmem:[#allocation2 + $0x20] sm:$0xff]
    %v494 = vld [vmem:[#allocation2 + $0x28] sm:$0xff]
    %v495 = vld [vmem:[#allocation2 + $0x30] sm:$0xff]
    %v496 = vld [vmem:[#allocation2 + $0x38] sm:$0xff]
    %v497 = vld [vmem:[#allocation2 + $0x40] sm:$0xff]
    %v498 = vld [vmem:[#allocation2 + $0x48] sm:$0xff]
    %v499 = vld [vmem:[#allocation2 + $0x50] sm:$0xff]
    %v500 = vld [vmem:[#allocation2 + $0x58] sm:$0xff]
    %v501 = vld [vmem:[#allocation2 + $0x60] sm:$0xff]
    %v502 = vld [vmem:[#allocation2 + $0x68] sm:$0xff]
    %v503 = vld [vmem:[#allocation2 + $0x70] sm:$0xff]
    %v504 = vld [vmem:[#allocation2 + $0x78] sm:$0xff]
    %v507 = vrot.slane %v421, 7
    %v508 = vrot.slane %v422, 6
    %v509 = vsel %vm183, %v508, %v507
    %511 = vmatpush.msra.mxu0 %v504
    %512 = vmatpush.msra.mxu0 %v503
    %513 = vmatpush.msra.mxu0 %v502
    %514 = vmatpush.msra.mxu0 %v501
    %515 = vmatpush.msra.mxu0 %v500
    %516 = vmatpush.msra.mxu0 %v499
    %517 = vmatpush.msra.mxu0 %v498
    %518 = vmatpush.msra.mxu0 %v497
    %519 = vmatpush.msra.mxu0 %v496
    %520 = vmatpush.msra.mxu0 %v495
    %521 = vmatpush.msra.mxu0 %v494
    %522 = vmatpush.msra.mxu0 %v493
    %523 = vmatpush.msra.mxu0 %v492
    %524 = vmatpush.msra.mxu0 %v491
    %525 = vmatpush.msra.mxu0 %v490
    %526 = vmatpush.msra.mxu0 %v489
    %527 = vmatmul.f32.gmra.mxu0 %v509
    %v528 = vpop.f32.mrf.mxu0
    %v529 = vadd.f32 0.0, %v528
    %530 = vdwg.mxu0
    %v532 = vrot.slane %v529, 1
    %v535 = vadd.f32 %v484, %v529
    %v536 = vadd.f32 %v487, %v532
    %v537 = vtanh.pop %v535
    %v538 = vtanh.pop %v536
    %v541 = vrot.slane %v538, 7
    %v542 = vsel %vm183, %v541, %v537
    %544 = vmatpush.msra.mxu0 %v504
    %545 = vmatpush.msra.mxu0 %v503
    %546 = vmatpush.msra.mxu0 %v502
    %547 = vmatpush.msra.mxu0 %v501
    %548 = vmatpush.msra.mxu0 %v500
    %549 = vmatpush.msra.mxu0 %v499
    %550 = vmatpush.msra.mxu0 %v498
    %551 = vmatpush.msra.mxu0 %v497
    %552 = vmatpush.msra.mxu0 %v496
    %553 = vmatpush.msra.mxu0 %v495
    %554 = vmatpush.msra.mxu0 %v494
    %555 = vmatpush.msra.mxu0 %v493
    %556 = vmatpush.msra.mxu0 %v492
    %557 = vmatpush.msra.mxu0 %v491
    %558 = vmatpush.msra.mxu0 %v490
    %559 = vmatpush.msra.mxu0 %v489
    %560 = vmatmul.f32.gmra.mxu0 %v542
    %v561 = vpop.f32.mrf.mxu0
    %v562 = vadd.f32 0.0, %v561
    %563 = vdwg.mxu0
    %v565 = vrot.slane %v562, 7
    %v568 = vadd.f32 %v484, %v565
    %v569 = vadd.f32 %v487, %v562
    %v570 = vtanh.pop %v568
    %v571 = vtanh.pop %v569
    %v574 = vrot.slane %v570, 1
    %v575 = vsel %vm183, %v571, %v574
    %577 = vmatpush.msra.mxu0 %v504
    %578 = vmatpush.msra.mxu0 %v503
    %579 = vmatpush.msra.mxu0 %v502
    %580 = vmatpush.msra.mxu0 %v501
    %581 = vmatpush.msra.mxu0 %v500
    %582 = vmatpush.msra.mxu0 %v499
    %583 = vmatpush.msra.mxu0 %v498
    %584 = vmatpush.msra.mxu0 %v497
    %585 = vmatpush.msra.mxu0 %v496
    %586 = vmatpush.msra.mxu0 %v495
    %587 = vmatpush.msra.mxu0 %v494
    %588 = vmatpush.msra.mxu0 %v493
    %589 = vmatpush.msra.mxu0 %v492
    %590 = vmatpush.msra.mxu0 %v491
    %591 = vmatpush.msra.mxu0 %v490
    %592 = vmatpush.msra.mxu0 %v489
    %593 = vmatmul.f32.gmra.mxu0 %v575
    %v594 = vpop.f32.mrf.mxu0
    %v595 = vadd.f32 0.0, %v594
    %596 = vdwg.mxu0
    %v598 = vrot.slane %v595, 6
    %v599 = vrot.slane %v595, 7
    %v602 = vadd.f32 %v484, %v598
    %v603 = vadd.f32 %v487, %v599
    %v604 = vtanh.pop %v602
    %v605 = vtanh.pop %v603
    %v608 = vrot.slane %v604, 2
    %v609 = vrot.slane %v605, 1
    %v610 = vsel %vm183, %v609, %v608
    %612 = vmatpush.msra.mxu0 %v504
    %613 = vmatpush.msra.mxu0 %v503
    %614 = vmatpush.msra.mxu0 %v502
    %615 = vmatpush.msra.mxu0 %v501
    %616 = vmatpush.msra.mxu0 %v500
    %617 = vmatpush.msra.mxu0 %v499
    %618 = vmatpush.msra.mxu0 %v498
    %619 = vmatpush.msra.mxu0 %v497
    %620 = vmatpush.msra.mxu0 %v496
    %621 = vmatpush.msra.mxu0 %v495
    %622 = vmatpush.msra.mxu0 %v494
    %623 = vmatpush.msra.mxu0 %v493
    %624 = vmatpush.msra.mxu0 %v492
    %625 = vmatpush.msra.mxu0 %v491
    %626 = vmatpush.msra.mxu0 %v490
    %627 = vmatpush.msra.mxu0 %v489
    %628 = vmatmul.f32.gmra.mxu0 %v610
    %v629 = vpop.f32.mrf.mxu0
    %v630 = vadd.f32 0.0, %v629
    %631 = vdwg.mxu0
    %v633 = vrot.slane %v630, 5
    %v634 = vrot.slane %v630, 6
    %v637 = vadd.f32 %v484, %v633
    %v638 = vadd.f32 %v487, %v634
    %v639 = vtanh.pop %v637
    %v640 = vtanh.pop %v638
    %v643 = vrot.slane %v639, 3
    %v644 = vrot.slane %v640, 2
    %v645 = vsel %vm183, %v644, %v643
    %647 = vmatpush.msra.mxu0 %v504
    %648 = vmatpush.msra.mxu0 %v503
    %649 = vmatpush.msra.mxu0 %v502
    %650 = vmatpush.msra.mxu0 %v501
    %651 = vmatpush.msra.mxu0 %v500
    %652 = vmatpush.msra.mxu0 %v499
    %653 = vmatpush.msra.mxu0 %v498
    %654 = vmatpush.msra.mxu0 %v497
    %655 = vmatpush.msra.mxu0 %v496
    %656 = vmatpush.msra.mxu0 %v495
    %657 = vmatpush.msra.mxu0 %v494
    %658 = vmatpush.msra.mxu0 %v493
    %659 = vmatpush.msra.mxu0 %v492
    %660 = vmatpush.msra.mxu0 %v491
    %661 = vmatpush.msra.mxu0 %v490
    %662 = vmatpush.msra.mxu0 %v489
    %663 = vmatmul.f32.gmra.mxu0 %v645
    %v664 = vpop.f32.mrf.mxu0
    %v665 = vadd.f32 0.0, %v664
    %666 = vdwg.mxu0
    %v668 = vrot.slane %v665, 4
    %v669 = vrot.slane %v665, 5
    %v672 = vadd.f32 %v484, %v668
    %v673 = vadd.f32 %v487, %v669
    %v674 = vtanh.pop %v672
    %v675 = vtanh.pop %v673
    %v678 = vrot.slane %v674, 4
    %v679 = vrot.slane %v675, 3
    %v680 = vsel %vm183, %v679, %v678
    %682 = vmatpush.msra.mxu0 %v504
    %683 = vmatpush.msra.mxu0 %v503
    %684 = vmatpush.msra.mxu0 %v502
    %685 = vmatpush.msra.mxu0 %v501
    %686 = vmatpush.msra.mxu0 %v500
    %687 = vmatpush.msra.mxu0 %v499
    %688 = vmatpush.msra.mxu0 %v498
    %689 = vmatpush.msra.mxu0 %v497
    %690 = vmatpush.msra.mxu0 %v496
    %691 = vmatpush.msra.mxu0 %v495
    %692 = vmatpush.msra.mxu0 %v494
    %693 = vmatpush.msra.mxu0 %v493
    %694 = vmatpush.msra.mxu0 %v492
    %695 = vmatpush.msra.mxu0 %v491
    %696 = vmatpush.msra.mxu0 %v490
    %697 = vmatpush.msra.mxu0 %v489
    %698 = vmatmul.f32.gmra.mxu0 %v680
    %v699 = vpop.f32.mrf.mxu0
    %v700 = vadd.f32 0.0, %v699
    %701 = vdwg.mxu0
    %v703 = vrot.slane %v700, 3
    %v704 = vrot.slane %v700, 4
    %v707 = vadd.f32 %v484, %v703
    %v708 = vadd.f32 %v487, %v704
    %v709 = vtanh.pop %v707
    %v710 = vtanh.pop %v708
    %v713 = vrot.slane %v709, 5
    %v714 = vrot.slane %v710, 4
    %v715 = vsel %vm183, %v714, %v713
    %717 = vmatpush.msra.mxu0 %v504
    %718 = vmatpush.msra.mxu0 %v503
    %719 = vmatpush.msra.mxu0 %v502
    %720 = vmatpush.msra.mxu0 %v501
    %721 = vmatpush.msra.mxu0 %v500
    %722 = vmatpush.msra.mxu0 %v499
    %723 = vmatpush.msra.mxu0 %v498
    %724 = vmatpush.msra.mxu0 %v497
    %725 = vmatpush.msra.mxu0 %v496
    %726 = vmatpush.msra.mxu0 %v495
    %727 = vmatpush.msra.mxu0 %v494
    %728 = vmatpush.msra.mxu0 %v493
    %729 = vmatpush.msra.mxu0 %v492
    %730 = vmatpush.msra.mxu0 %v491
    %731 = vmatpush.msra.mxu0 %v490
    %732 = vmatpush.msra.mxu0 %v489
    %733 = vmatmul.f32.gmra.mxu0 %v715
    %v734 = vpop.f32.mrf.mxu0
    %v735 = vadd.f32 0.0, %v734
    %736 = vdwg.mxu0
    %v738 = vrot.slane %v735, 2
    %v739 = vrot.slane %v735, 3
    %v742 = vadd.f32 %v484, %v738
    %v743 = vadd.f32 %v487, %v739
    %v744 = vtanh.pop %v742
    %v745 = vtanh.pop %v743
    %v748 = vrot.slane %v744, 6
    %v749 = vrot.slane %v745, 5
    %v750 = vsel %vm183, %v749, %v748
    %752 = vmatpush.msra.mxu0 %v504
    %753 = vmatpush.msra.mxu0 %v503
    %754 = vmatpush.msra.mxu0 %v502
    %755 = vmatpush.msra.mxu0 %v501
    %756 = vmatpush.msra.mxu0 %v500
    %757 = vmatpush.msra.mxu0 %v499
    %758 = vmatpush.msra.mxu0 %v498
    %759 = vmatpush.msra.mxu0 %v497
    %760 = vmatpush.msra.mxu0 %v496
    %761 = vmatpush.msra.mxu0 %v495
    %762 = vmatpush.msra.mxu0 %v494
    %763 = vmatpush.msra.mxu0 %v493
    %764 = vmatpush.msra.mxu0 %v492
    %765 = vmatpush.msra.mxu0 %v491
    %766 = vmatpush.msra.mxu0 %v490
    %767 = vmatpush.msra.mxu0 %v489
    %768 = vmatmul.f32.gmra.mxu0 %v750
    %v769 = vpop.f32.mrf.mxu0
    %v770 = vadd.f32 0.0, %v769
    %771 = vdwg.mxu0
    %v773 = vrot.slane %v770, 1
    %v774 = vrot.slane %v770, 2
    %v777 = vadd.f32 %v484, %v773
    %v778 = vadd.f32 %v487, %v774
    %v779 = vtanh.pop %v777
    %v780 = vtanh.pop %v778
    %v781 = vsel %vm423, %v537, %v570
    %v782 = vsel %vm423, %v538, %v571
    %v783 = vsel %vm426, %v781, %v604
    %v784 = vsel %vm426, %v782, %v605
    %v785 = vsel %vm429, %v783, %v639
    %v786 = vsel %vm429, %v784, %v640
    %v787 = vsel %vm432, %v785, %v674
    %v788 = vsel %vm432, %v786, %v675
    %v789 = vsel %vm435, %v787, %v709
    %v790 = vsel %vm435, %v788, %v710
    %v791 = vsel %vm438, %v789, %v744
    %v792 = vsel %vm438, %v790, %v745
    %v793 = vsel %vm441, %v791, %v779
    %v794 = vsel %vm441, %v792, %v780
    %795 = vmatpush.xpose.msra.mxu0 0.0
    %796 = vmatpush.xpose.msra.mxu0 0.0
    %797 = vmatpush.xpose.msra.mxu0 0.0
    %798 = vmatpush.xpose.msra.mxu0 0.0
    %799 = vmatpush.xpose.msra.mxu0 0.0
    %800 = vmatpush.xpose.msra.mxu0 0.0
    %801 = vmatpush.xpose.msra.mxu0 0.0
    %802 = vmatpush.xpose.msra.mxu0 0.0
    %803 = vmatpush.xpose.msra.mxu0 0.0
    %804 = vmatpush.xpose.msra.mxu0 0.0
    %805 = vmatpush.xpose.msra.mxu0 0.0
    %806 = vmatpush.xpose.msra.mxu0 0.0
    %807 = vmatpush.xpose.msra.mxu0 0.0
    %808 = vmatpush.xpose.msra.mxu0 0.0
    %809 = vmatpush.xpose.msra.mxu0 0.0
    %810 = vmatpush.xpose.msra.mxu0 %v442
    %811 = vmatmul.f32.gmra.mxu0 %v793
    %v812 = vpop.f32.mrf.mxu0
    %v813 = vadd.f32 0.0, %v812
    %814 = vdwg.mxu0
    %815 = vmatpush.xpose.msra.mxu0 0.0
    %816 = vmatpush.xpose.msra.mxu0 0.0
    %817 = vmatpush.xpose.msra.mxu0 0.0
    %818 = vmatpush.xpose.msra.mxu0 0.0
    %819 = vmatpush.xpose.msra.mxu0 0.0
    %820 = vmatpush.xpose.msra.mxu0 0.0
    %821 = vmatpush.xpose.msra.mxu0 0.0
    %822 = vmatpush.xpose.msra.mxu0 0.0
    %823 = vmatpush.xpose.msra.mxu0 0.0
    %824 = vmatpush.xpose.msra.mxu0 0.0
    %825 = vmatpush.xpose.msra.mxu0 0.0
    %826 = vmatpush.xpose.msra.mxu0 0.0
    %827 = vmatpush.xpose.msra.mxu0 0.0
    %828 = vmatpush.xpose.msra.mxu0 0.0
    %829 = vmatpush.xpose.msra.mxu0 0.0
    %830 = vmatpush.xpose.msra.mxu0 %v443
    %831 = vmatmul.f32.gmra.mxu0 %v794
    %v832 = vpop.f32.mrf.mxu0
    %v833 = vadd.f32 0.0, %v832
    %834 = vdwg.mxu0
    %vm835 = vcmask 64512
    %v836 = vsel %vm835, %v813, -inf
    %837 = vmax.xlane.f32.xlu0 %v836
    %v838 = vpop.xlane.xlu0 %837
    %v839 = vsel %vm835, %v833, -inf
    %840 = vmax.xlane.f32.xlu0 %v839
    %v841 = vpop.xlane.xlu0 %840
    %v842 = vsub.f32 %v813, %v838
    %v843 = vsub.f32 %v833, %v841
    %v844 = vmul.f32 %v842, 1.442695
    %v845 = vpow.pop %v844
    %v846 = vmul.f32 %v843, 1.442695
    %v847 = vpow.pop %v846
    %v848 = vsel %vm835, %v845, 0.0
    %849 = vadd.xlane.f32.xlu0 %v848
    %v850 = vpop.xlane.xlu0 %849
    %v851 = vsel %vm835, %v847, 0.0
    %852 = vadd.xlane.f32.xlu0 %v851
    %v853 = vpop.xlane.xlu0 %852
    %v854 = vrcp.pop %v850
    %v855 = vmul.f32 %v850, %v854
    %v856 = vsub.f32 1.0, %v855
    %v857 = vmul.f32 %v854, %v856
    %v858 = vadd.f32 %v854, %v857
    %vm859 = vweird.f32 %v850
    %vm860 = vweird.f32 %v854
    %vm861 = vmor %vm859, %vm860
    %v862 = vsel %vm861, %v854, %v858
    %v863 = vand.u32 2147483647, %v850
    %vm864 = vcmp.eq.f32.partialorder %v863, 8.507059e+37
    %v865 = vand.u32 %v850, 2147483648
    %v866 = vor.u32 1.1754944e-38, %v865
    %v867 = vsel %vm864, %v866, %v862
    %v868 = vrcp.pop %v853
    %v869 = vmul.f32 %v853, %v868
    %v870 = vsub.f32 1.0, %v869
    %v871 = vmul.f32 %v868, %v870
    %v872 = vadd.f32 %v868, %v871
    %vm873 = vweird.f32 %v853
    %vm874 = vweird.f32 %v868
    %vm875 = vmor %vm873, %vm874
    %v876 = vsel %vm875, %v868, %v872
    %v877 = vand.u32 2147483647, %v853
    %vm878 = vcmp.eq.f32.partialorder %v877, 8.507059e+37
    %v879 = vand.u32 %v853, 2147483648
    %v880 = vor.u32 1.1754944e-38, %v879
    %v881 = vsel %vm878, %v880, %v876
    %v882 = vmul.f32 %v845, %v867
    %v883 = vmul.f32 %v847, %v881
    %884 = vst.msk [vmem:[%s13] sm:$0xff] %vm835, %v882
    %885 = vst.msk [vmem:[%s13 + $0x8] sm:$0xff] %vm835, %v883
    %v887 = vsel %vm835, %v882, 0
    %889 = vmatpush.msra.mxu0 0.0
    %890 = vmatpush.msra.mxu0 0.0
    %891 = vmatpush.msra.mxu0 0.0
    %892 = vmatpush.msra.mxu0 0.0
    %893 = vmatpush.msra.mxu0 0.0
    %894 = vmatpush.msra.mxu0 0.0
    %895 = vmatpush.msra.mxu0 0.0
    %896 = vmatpush.msra.mxu0 0.0
    %897 = vmatpush.msra.mxu0 0.0
    %898 = vmatpush.msra.mxu0 0.0
    %899 = vmatpush.msra.mxu0 0.0
    %900 = vmatpush.msra.mxu0 0.0
    %901 = vmatpush.msra.mxu0 0.0
    %902 = vmatpush.msra.mxu0 0.0
    %903 = vmatpush.msra.mxu0 0.0
    %904 = vmatpush.msra.mxu0 %v442
    %905 = vmatmul.f32.gmra.mxu0 %v887
    %v906 = vpop.f32.mrf.mxu0
    %v907 = vadd.f32 0.0, %v906
    %908 = vdwg.mxu0
    %v910 = vsel %vm835, %v883, 0
    %912 = vmatpush.msra.mxu0 0.0
    %913 = vmatpush.msra.mxu0 0.0
    %914 = vmatpush.msra.mxu0 0.0
    %915 = vmatpush.msra.mxu0 0.0
    %916 = vmatpush.msra.mxu0 0.0
    %917 = vmatpush.msra.mxu0 0.0
    %918 = vmatpush.msra.mxu0 0.0
    %919 = vmatpush.msra.mxu0 0.0
    %920 = vmatpush.msra.mxu0 0.0
    %921 = vmatpush.msra.mxu0 0.0
    %922 = vmatpush.msra.mxu0 0.0
    %923 = vmatpush.msra.mxu0 0.0
    %924 = vmatpush.msra.mxu0 0.0
    %925 = vmatpush.msra.mxu0 0.0
    %926 = vmatpush.msra.mxu0 0.0
    %927 = vmatpush.msra.mxu0 %v443
    %928 = vmatmul.f32.gmra.mxu0 %v910
    %v929 = vpop.f32.mrf.mxu0
    %v930 = vadd.f32 0.0, %v929
    %931 = vdwg.mxu0
    %v932 = vld [vmem:[#allocation4] sm:$0xff]
    %v933 = vld [vmem:[#allocation4 + $0x8] sm:$0xff]
    %v934 = vld [vmem:[#allocation4 + $0x10] sm:$0xff]
    %v935 = vld [vmem:[#allocation4 + $0x18] sm:$0xff]
    %v936 = vld [vmem:[#allocation4 + $0x20] sm:$0xff]
    %v937 = vld [vmem:[#allocation4 + $0x28] sm:$0xff]
    %v938 = vld [vmem:[#allocation4 + $0x30] sm:$0xff]
    %v939 = vld [vmem:[#allocation4 + $0x38] sm:$0xff]
    %v940 = vld [vmem:[#allocation4 + $0x40] sm:$0xff]
    %v941 = vld [vmem:[#allocation4 + $0x48] sm:$0xff]
    %v942 = vld [vmem:[#allocation4 + $0x50] sm:$0xff]
    %v943 = vld [vmem:[#allocation4 + $0x58] sm:$0xff]
    %v944 = vld [vmem:[#allocation4 + $0x60] sm:$0xff]
    %v945 = vld [vmem:[#allocation4 + $0x68] sm:$0xff]
    %v946 = vld [vmem:[#allocation4 + $0x70] sm:$0xff]
    %v947 = vld [vmem:[#allocation4 + $0x78] sm:$0xff]
    %v948 = vld [vmem:[#allocation6] sm:$0xff]
    %v949 = vld [vmem:[#allocation6 + $0x8] sm:$0xff]
    %v950 = vld [vmem:[#allocation6 + $0x10] sm:$0xff]
    %v951 = vld [vmem:[#allocation6 + $0x18] sm:$0xff]
    %v952 = vld [vmem:[#allocation6 + $0x20] sm:$0xff]
    %v953 = vld [vmem:[#allocation6 + $0x28] sm:$0xff]
    %v954 = vld [vmem:[#allocation6 + $0x30] sm:$0xff]
    %v955 = vld [vmem:[#allocation6 + $0x38] sm:$0xff]
    %v956 = vld [vmem:[#allocation6 + $0x40] sm:$0xff]
    %v957 = vld [vmem:[#allocation6 + $0x48] sm:$0xff]
    %v958 = vld [vmem:[#allocation6 + $0x50] sm:$0xff]
    %v959 = vld [vmem:[#allocation6 + $0x58] sm:$0xff]
    %v960 = vld [vmem:[#allocation6 + $0x60] sm:$0xff]
    %v961 = vld [vmem:[#allocation6 + $0x68] sm:$0xff]
    %v962 = vld [vmem:[#allocation6 + $0x70] sm:$0xff]
    %v963 = vld [vmem:[#allocation6 + $0x78] sm:$0xff]
    %964 = vmatpush.msra.mxu0 %v963
    %965 = vmatpush.msra.mxu0 %v962
    %966 = vmatpush.msra.mxu0 %v961
    %967 = vmatpush.msra.mxu0 %v960
    %968 = vmatpush.msra.mxu0 %v959
    %969 = vmatpush.msra.mxu0 %v958
    %970 = vmatpush.msra.mxu0 %v957
    %971 = vmatpush.msra.mxu0 %v956
    %972 = vmatpush.msra.mxu0 %v955
    %973 = vmatpush.msra.mxu0 %v954
    %974 = vmatpush.msra.mxu0 %v953
    %975 = vmatpush.msra.mxu0 %v952
    %976 = vmatpush.msra.mxu0 %v951
    %977 = vmatpush.msra.mxu0 %v950
    %978 = vmatpush.msra.mxu0 %v949
    %979 = vmatpush.msra.mxu0 %v948
    %980 = vmatmul.f32.gmra.mxu0 %v907
    %v981 = vpop.f32.mrf.mxu0
    %v982 = vadd.f32 0.0, %v981
    %983 = vmatmul.f32.gmra.mxu0 %v930
    %v984 = vpop.f32.mrf.mxu0
    %v985 = vadd.f32 0.0, %v984
    %986 = vdwg.mxu0
    %987 = vmatpush.msra.mxu0 %v947
    %988 = vmatpush.msra.mxu0 %v946
    %989 = vmatpush.msra.mxu0 %v945
    %990 = vmatpush.msra.mxu0 %v944
    %991 = vmatpush.msra.mxu0 %v943
    %992 = vmatpush.msra.mxu0 %v942
    %993 = vmatpush.msra.mxu0 %v941
    %994 = vmatpush.msra.mxu0 %v940
    %995 = vmatpush.msra.mxu0 %v939
    %996 = vmatpush.msra.mxu0 %v938
    %997 = vmatpush.msra.mxu0 %v937
    %998 = vmatpush.msra.mxu0 %v936
    %999 = vmatpush.msra.mxu0 %v935
    %1000 = vmatpush.msra.mxu0 %v934
    %1001 = vmatpush.msra.mxu0 %v933
    %1002 = vmatpush.msra.mxu0 %v932
    %1003 = vmatmul.f32.gmra.mxu0 %v793
    %v1004 = vpop.f32.mrf.mxu0
    %v1005 = vadd.f32 %v982, %v1004
    %1006 = vmatmul.f32.gmra.mxu0 %v794
    %v1007 = vpop.f32.mrf.mxu0
    %v1008 = vadd.f32 %v985, %v1007
    %1009 = vdwg.mxu0
    %v1010 = vld [vmem:[%s11] sm:$0x1]
    %v1012 = vperm.slane %v1010, 0
    %v1014 = vadd.f32 %v1005, %v1012
    %v1015 = vadd.f32 %v1008, %v1012
    %1016 = vst [vmem:[%s12] sm:$0xff] %v1014
    %1017 = vst [vmem:[%s12 + $0x8] sm:$0xff] %v1015
    // Predicated region
    $region62: #{seq2seq_forward.1} parent=1 // pred_check
      _
    $region63: #{seq2seq_forward.1} parent=1 // pred_check_branch
      %1019 = sbr.rel (0) target = $region65
    $region64: #{seq2seq_forward.1} parent=1 // pred_region
      _
    $region65: #{seq2seq_forward.1} parent=1 // pred_fallthru
      _
    // Predicated region
    $region66: #{seq2seq_forward.1} parent=1 // pred_check
      _
    $region67: #{seq2seq_forward.1} parent=1 // pred_check_branch
      %1021 = sbr.rel (0) target = $region69
    $region68: #{seq2seq_forward.1} parent=1 // pred_region
      _
    $region69: #{seq2seq_forward.1} parent=1 // pred_fallthru
      _
    // Predicated region
    $region70: #{seq2seq_forward.1} parent=1 // pred_check
      _
    $region71: #{seq2seq_forward.1} parent=1 // pred_check_branch
      %1023 = sbr.rel (0) target = $region73
    $region72: #{seq2seq_forward.1} parent=1 // pred_region
      _
    $region73: #{seq2seq_forward.1} parent=1 // pred_fallthru
      _
    // Predicated region
    $region74: #{seq2seq_forward.1} parent=1 // pred_check
      _
    $region75: #{seq2seq_forward.1} parent=1 // pred_check_branch
      %1025 = sbr.rel (0) target = $region77
    $region76: #{seq2seq_forward.1} parent=1 // pred_region
      _
    $region77: #{seq2seq_forward.1} parent=1 // pred_fallthru
      _
    %1026 = vsyncpa [#allocation3], 1
    %1027 = vsyncpa [#allocation5], 1

</llo_original>
